<compile_context>
chip_gen: v7x
topology: tpu7x:2x2x1
jax: 0.10.0
libtpu: 0.0.40
codegen_flags: <defaults>
</compile_context>

<pallas_src>
import math
from functools import partial

import jax
import jax.numpy as jnp
from jax import lax
from jax.experimental import pallas as pl
from jax.experimental.pallas import tpu as pltpu

_LN_EPS = 1e-5


# ---------------------------------------------------------------------------
# Small helpers
# ---------------------------------------------------------------------------
def _layernorm_f32(v, gamma, beta):
    mu = jnp.mean(v, axis=-1, keepdims=True)
    var = jnp.mean(jnp.square(v - mu), axis=-1, keepdims=True)
    return (v - mu) * lax.rsqrt(var + _LN_EPS) * gamma + beta


def _const_spec(arr, buffers):
    """BlockSpec for a grid-invariant array (constant index_map => DMA'd once)."""
    nd = arr.ndim
    if buffers == 1:
        # Single-buffer weights: the block index never changes, so the second
        # pipeline buffer is pure VMEM waste (matters most on v7x's 64 MiB VMEM).
        return pl.BlockSpec(arr.shape, lambda *_: (0,) * nd,
                            pipeline_mode=pl.Buffered(1))
    return pl.BlockSpec(arr.shape, lambda *_: (0,) * nd)


def _pick_row_tile(n, tile):
    """Largest divisor of n that is <= tile and a multiple of 8 (TPU sublane)."""
    if n <= tile:
        return n
    for t in range(min(tile, n), 7, -1):
        if n % t == 0 and t % 8 == 0:
            return t
    # No usable divisor: fall back to one full-length tile (correct, but no row
    # pipelining / megacore sharding over rows).
    # TODO(synk): pad n up to a tile multiple instead for ragged sequence lengths.
    return n


def _default_vmem_limit():
    # Use most of physical VMEM (128 MiB on v5e/v6e, 64 MiB on v7x) while leaving
    # headroom for compiler-internal scratch; conservative fallback if query fails.
    try:
        cap = pltpu.get_tpu_info().vmem_capacity_bytes
        return min(int(cap * 0.8), 104 * 1024 * 1024)
    except Exception:
        return 48 * 1024 * 1024


# ---------------------------------------------------------------------------
# Hoisted K/V projection kernel:  kv = (LN(x) | x) @ [Wk|Wv], once per batch row
# ---------------------------------------------------------------------------
def _kv_proj_kernel(*refs, apply_ln, compute_dtype):
    if apply_ln:
        x_ref, g_ref, b_ref, w_ref, o_ref = refs
    else:
        x_ref, w_ref, o_ref = refs
        g_ref = b_ref = None
    x = x_ref[0].astype(jnp.float32)                          # (TS, C)
    if apply_ln:
        x = _layernorm_f32(x, g_ref[0], b_ref[0])
    kv = jnp.dot(x.astype(compute_dtype), w_ref[...],
                 preferred_element_type=jnp.float32)          # (TS, 2C)
    o_ref[0] = kv.astype(o_ref.dtype)


def _kv_project(x, wkv, gamma=None, beta=None, *, compute_dtype, row_tile,
                vmem_limit, weight_buffers):
    B, S, C = x.shape
    C2 = wkv.shape[1]
    TS = _pick_row_tile(S, row_tile)
    apply_ln = gamma is not None

    in_specs = [pl.BlockSpec((1, TS, C), lambda b, s: (b, s, 0))]
    args = [x]
    if apply_ln:
        in_specs += [_const_spec(gamma, weight_buffers),
                     _const_spec(beta, weight_buffers)]
        args += [gamma, beta]
    in_specs.append(_const_spec(wkv, weight_buffers))
    args.append(wkv)

    return pl.pallas_call(
        partial(_kv_proj_kernel, apply_ln=apply_ln, compute_dtype=compute_dtype),
        out_shape=jax.ShapeDtypeStruct((B, S, C2), compute_dtype),
        grid=(B, S // TS),
        in_specs=in_specs,
        out_specs=pl.BlockSpec((1, TS, C2), lambda b, s: (b, s, 0)),
        compiler_params=pltpu.CompilerParams(
            dimension_semantics=("parallel", "parallel"),
            vmem_limit_bytes=vmem_limit),
    )(*args)


# ---------------------------------------------------------------------------
# Main fused block kernel
# ---------------------------------------------------------------------------
def _block_kernel(
    # data
    x_ref, kv1_ref, kv2_ref,
    # norm1 + self-attention (scale folded into wq; K/V precomputed)
    g1_ref, be1_ref, wq1_ref, wo1_ref, bo1_ref,
    # norm2 + cross-attention (K/V precomputed from context)
    g2_ref, be2_ref, wq2_ref, wo2_ref, bo2_ref,
    # norm3 + mlp
    g3_ref, be3_ref, w1_ref, bb1_ref, w2_ref, bb2_ref,
    # output
    o_ref,
    *, num_heads: int, compute_dtype,
):
    f32 = jnp.float32
    approx_recip = jnp.dtype(compute_dtype) != jnp.dtype(jnp.float32)

    x = x_ref[0].astype(f32)               # (TQ, C) residual stream / query rows
    TQ, C = x.shape
    H = num_heads
    d = C // H

    def mha(q_src, kv_ref, wq_ref, wo_ref, bo_ref):
        # q_src: (TQ, C) f32, already layer-normed.  kv_ref: (1, S, 2C) precomputed
        # K|V.  wq already carries the 1/sqrt(d) attention scale (folded host-side).
        q = jnp.dot(q_src.astype(compute_dtype), wq_ref[...],
                    preferred_element_type=f32)                       # (TQ, C)
        q_h = q.astype(compute_dtype).reshape(TQ, H, d)               # (TQ, H, d)
        k_h = kv_ref[0, :, :C].reshape(-1, H, d)                      # (S,  H, d)
        v_h = kv_ref[0, :, C:].reshape(-1, H, d)                      # (S,  H, d)

        # Batched-head contractions: one relayout per operand instead of per-head
        # lane slices + stack / lane-dim concatenate.
        # TODO(synk): for head_dim <= 64 on v6e/v7x, pack several heads per MXU
        # call (block-diagonal K/V) to fill the 256-wide MXU.
        s = jnp.einsum('rhd,shd->hrs', q_h, k_h, preferred_element_type=f32)
        s = s - jnp.max(s, axis=-1, keepdims=True)
        p = jnp.exp(s)
        p = p * pl.reciprocal(jnp.sum(p, axis=-1, keepdims=True), approx=approx_recip)
        o = jnp.einsum('hrs,shd->rhd', p.astype(compute_dtype), v_h,
                       preferred_element_type=f32)                    # (TQ, H, d)
        o = o.reshape(TQ, C).astype(compute_dtype)
        return jnp.dot(o, wo_ref[...], preferred_element_type=f32) + bo_ref[0]

    # --- self-attention: queries from this row tile, K/V = LN1(x_full) @ Wkv1 ---
    x = x + mha(_layernorm_f32(x, g1_ref[0], be1_ref[0]), kv1_ref,
                wq1_ref, wo1_ref, bo1_ref)

    # --- cross-attention: K/V = context @ Wkv2 (context NOT layer-normed) ---
    x = x + mha(_layernorm_f32(x, g2_ref[0], be2_ref[0]), kv2_ref,
                wq2_ref, wo2_ref, bo2_ref)

    # --- MLP (exact-erf GELU, matching torch.nn.GELU default) ---
    xn3 = _layernorm_f32(x, g3_ref[0], be3_ref[0]).astype(compute_dtype)
    hid = jnp.dot(xn3, w1_ref[...], preferred_element_type=f32) + bb1_ref[0]
    hid = 0.5 * hid * (1.0 + lax.erf(hid * (1.0 / math.sqrt(2.0))))
    mlp = jnp.dot(hid.astype(compute_dtype), w2_ref[...],
                  preferred_element_type=f32) + bb2_ref[0]

    o_ref[0] = (x + mlp).astype(o_ref.dtype)


# ---------------------------------------------------------------------------
# Wrapper
# ---------------------------------------------------------------------------
def _forward_impl(x, context, params, num_heads, compute_dtype, q_tile,
                  vmem_limit_bytes, weight_buffers):
    B, N, C = x.shape
    _, M, _ = context.shape
    assert C % num_heads == 0
    f32 = jnp.float32
    cdt = compute_dtype
    scale = (C // num_heads) ** -0.5

    # Activations cast at the boundary (halves the HBM->VMEM DMA in bf16 mode);
    # LN statistics, softmax and the residual accumulation stay f32 in-kernel.
    x_in = x.astype(cdt)
    ctx_in = context.astype(cdt)

    # Parameter packing: fold attention scale into Wq, fuse Wk|Wv, cast matmul
    # weights to the compute dtype; LN params / biases stay f32 (added to f32 accs).
    g1 = params["n1_g"].astype(f32); be1 = params["n1_b"].astype(f32)
    g2 = params["n2_g"].astype(f32); be2 = params["n2_b"].astype(f32)
    g3 = params["n3_g"].astype(f32); be3 = params["n3_b"].astype(f32)
    wq1 = (params["a1_wq"] * scale).astype(cdt)
    wq2 = (params["a2_wq"] * scale).astype(cdt)
    wkv1 = jnp.concatenate([params["a1_wk"], params["a1_wv"]], axis=1).astype(cdt)
    wkv2 = jnp.concatenate([params["a2_wk"], params["a2_wv"]], axis=1).astype(cdt)
    wo1 = params["a1_wo"].astype(cdt); bo1 = params["a1_bo"].astype(f32)
    wo2 = params["a2_wo"].astype(cdt); bo2 = params["a2_bo"].astype(f32)
    w1 = params["mlp_w1"].astype(cdt); bb1 = params["mlp_b1"].astype(f32)
    w2 = params["mlp_w2"].astype(cdt); bb2 = params["mlp_b2"].astype(f32)

    # Hoisted, grid-invariant K/V projections (once per batch row, NOT per q tile).
    kv1 = _kv_project(x_in, wkv1, g1, be1, compute_dtype=cdt, row_tile=q_tile,
                      vmem_limit=vmem_limit_bytes, weight_buffers=weight_buffers)
    kv2 = _kv_project(ctx_in, wkv2, compute_dtype=cdt, row_tile=q_tile,
                      vmem_limit=vmem_limit_bytes, weight_buffers=weight_buffers)

    TQ = _pick_row_tile(N, q_tile)
    NT = N // TQ

    weights = [g1, be1, wq1, wo1, bo1,
               g2, be2, wq2, wo2, bo2,
               g3, be3, w1, bb1, w2, bb2]

    in_specs = [
        pl.BlockSpec((1, TQ, C), lambda b, t: (b, t, 0)),        # x: query/residual tile
        pl.BlockSpec((1, N, 2 * C), lambda b, t: (b, 0, 0)),     # self-attn K|V (per batch)
        pl.BlockSpec((1, M, 2 * C), lambda b, t: (b, 0, 0)),     # cross-attn K|V (per batch)
    ] + [_const_spec(w, weight_buffers) for w in weights]

    out = pl.pallas_call(
        partial(_block_kernel, num_heads=num_heads, compute_dtype=cdt),
        out_shape=jax.ShapeDtypeStruct((B, N, C), x.dtype),
        grid=(B, NT),
        in_specs=in_specs,
        out_specs=pl.BlockSpec((1, TQ, C), lambda b, t: (b, t, 0)),
        compiler_params=pltpu.CompilerParams(
            dimension_semantics=("parallel", "parallel"),
            vmem_limit_bytes=vmem_limit_bytes),
    )(x_in, kv1, kv2, *weights)
    # Force compile/runtime errors to surface here (so the fallback below works).
    return jax.block_until_ready(out)


def block_forward(x, context, params, num_heads, compute_dtype=jnp.bfloat16,
                  q_tile=None, vmem_limit_bytes=None):
    if vmem_limit_bytes is None:
        vmem_limit_bytes = _default_vmem_limit()
    if q_tile is None:
        # Bigger row tiles on 128 MiB-VMEM chips (v5e/v6e), smaller on v7x (64 MiB).
        q_tile = 512 if vmem_limit_bytes >= 96 * 2**20 else (
            256 if vmem_limit_bytes >= 56 * 2**20 else 128)
    try:
        return _forward_impl(x, context, params, num_heads, compute_dtype,
                             q_tile, vmem_limit_bytes, weight_buffers=1)
    except Exception:
        # Fallback if single-buffered weight specs (pipeline_mode=pl.Buffered(1))
        # are not supported by the installed Pallas version.
        return _forward_impl(x, context, params, num_heads, compute_dtype,
                             q_tile, vmem_limit_bytes, weight_buffers=2)


# ---------------------------------------------------------------------------
# Pure-JAX reference (mirrors the PyTorch module semantics, f32 everywhere)
# ---------------------------------------------------------------------------
def block_reference(x, context, params, num_heads):
    C = x.shape[-1]
    head_dim = C // num_heads
    scale = head_dim ** -0.5

    def ln(v, g, b):
        mu = jnp.mean(v, axis=-1, keepdims=True)
        var = jnp.mean((v - mu) ** 2, axis=-1, keepdims=True)
        return (v - mu) / jnp.sqrt(var + 1e-5) * g[0] + b[0]

    def attn(q_in, kv_in, wq, wk, wv, wo, bo):
        B, N, _ = q_in.shape
        M = kv_in.shape[1]
        q = (q_in @ wq).reshape(B, N, num_heads, head_dim).transpose(0, 2, 1, 3)
        k = (kv_in @ wk).reshape(B, M, num_heads, head_dim).transpose(0, 2, 1, 3)
        v = (kv_in @ wv).reshape(B, M, num_heads, head_dim).transpose(0, 2, 1, 3)
        s = jnp.einsum("bhnd,bhmd->bhnm", q, k) * scale
        p = jax.nn.softmax(s, axis=-1)
        o = jnp.einsum("bhnm,bhmd->bhnd", p, v).transpose(0, 2, 1, 3).reshape(B, N, C)
        return o @ wo + bo[0]

    def gelu_exact(v):
        return 0.5 * v * (1.0 + lax.erf(v / jnp.sqrt(2.0)))

    xn = ln(x, params["n1_g"], params["n1_b"])
    x = x + attn(xn, xn, params["a1_wq"], params["a1_wk"], params["a1_wv"],
                 params["a1_wo"], params["a1_bo"])
    xn = ln(x, params["n2_g"], params["n2_b"])
    x = x + attn(xn, context, params["a2_wq"], params["a2_wk"], params["a2_wv"],
                 params["a2_wo"], params["a2_bo"])
    xn = ln(x, params["n3_g"], params["n3_b"])
    h = gelu_exact(xn @ params["mlp_w1"] + params["mlp_b1"][0])
    x = x + (h @ params["mlp_w2"] + params["mlp_b2"][0])
    return x


# ---------------------------------------------------------------------------
# Deterministic parameter init
# ---------------------------------------------------------------------------
def init_params(key, dim, num_heads, mlp_ratio=4.0):
    hidden = int(dim * mlp_ratio)
    keys = jax.random.split(key, 16)
    s = 0.02

    def w(k, shape):
        return jax.random.normal(k, shape, jnp.float32) * s

    return {
        # LayerNorms: weight=1, bias=0 (PyTorch default), stored as (1, C)
        "n1_g": jnp.ones((1, dim), jnp.float32), "n1_b": jnp.zeros((1, dim), jnp.float32),
        "n2_g": jnp.ones((1, dim), jnp.float32), "n2_b": jnp.zeros((1, dim), jnp.float32),
        "n3_g": jnp.ones((1, dim), jnp.float32), "n3_b": jnp.zeros((1, dim), jnp.float32),
        # attn1 (qkv_bias=False; output proj has bias)
        "a1_wq": w(keys[0], (dim, dim)), "a1_wk": w(keys[1], (dim, dim)),
        "a1_wv": w(keys[2], (dim, dim)), "a1_wo": w(keys[3], (dim, dim)),
        "a1_bo": jnp.zeros((1, dim), jnp.float32),
        # attn2
        "a2_wq": w(keys[4], (dim, dim)), "a2_wk": w(keys[5], (dim, dim)),
        "a2_wv": w(keys[6], (dim, dim)), "a2_wo": w(keys[7], (dim, dim)),
        "a2_bo": jnp.zeros((1, dim), jnp.float32),
        # mlp
        "mlp_w1": w(keys[8], (dim, hidden)), "mlp_b1": jnp.zeros((1, hidden), jnp.float32),
        "mlp_w2": w(keys[9], (hidden, dim)), "mlp_b2": jnp.zeros((1, dim), jnp.float32),
    }


# ---------------------------------------------------------------------------
if __name__ == "__main__":
    B, N, M, dim, num_heads = 2, 16, 8, 32, 4

    key = jax.random.PRNGKey(0)
    kx, kc, kp = jax.random.split(key, 3)
    x = jax.random.normal(kx, (B, N, dim), jnp.float32)
    context = jax.random.normal(kc, (B, M, dim), jnp.float32)
    params = init_params(kp, dim, num_heads)

    ref = block_reference(x, context, params, num_heads)

    # 1) f32 compute path: validates weight folding / fused KV / hoisted projections
    #    exactly (exact reciprocal, no bf16 rounding anywhere).
    out_f32 = jax.block_until_ready(
        block_forward(x, context, params, num_heads, compute_dtype=jnp.float32))
    assert out_f32.shape == (B, N, dim)
    diff_f32 = float(jnp.max(jnp.abs(out_f32 - ref)))
    assert jnp.allclose(out_f32, ref, atol=1e-3, rtol=1e-3), f"f32 max abs diff = {diff_f32}"

    # 2) bf16 compute path (MXU-native default): looser tolerance for bf16 matmuls
    #    and the bf16 input cast.
    out_bf16 = jax.block_until_ready(block_forward(x, context, params, num_heads))
    assert out_bf16.shape == (B, N, dim)
    diff_bf16 = float(jnp.max(jnp.abs(out_bf16 - ref)))
    assert jnp.allclose(out_bf16, ref, atol=2e-2, rtol=2e-2), f"bf16 max abs diff = {diff_bf16}"

    print("KERNEL_OK")
</pallas_src>

<mosaic_0001>
module attributes {stable_mosaic.version = 11 : i64} {
  func.func @_kv_proj_kernel(%arg0: i32, %arg1: i32, %arg2: memref<1x16x32xf32, #tpu.memory_space<vmem>>, %arg3: memref<1x32xf32, #tpu.memory_space<vmem>>, %arg4: memref<1x32xf32, #tpu.memory_space<vmem>>, %arg5: memref<32x64xf32, #tpu.memory_space<vmem>>, %arg6: memref<1x16x64xf32, #tpu.memory_space<vmem>>) attributes {dimension_semantics = [#tpu.dimension_semantics<parallel>, #tpu.dimension_semantics<parallel>], iteration_bounds = array<i64: 2, 1>, scalar_prefetch = 0 : i64, scratch_operands = 0 : i64, tpu.core_type = #tpu.core_type<tc>, window_params = [{transform_indices = @transform_0, window_bounds = array<i64: 1, 16, 32>}, {pipeline_mode = #tpu.pipeline_mode<synchronous>, transform_indices = @transform_1, window_bounds = array<i64: 1, 32>}, {pipeline_mode = #tpu.pipeline_mode<synchronous>, transform_indices = @transform_2, window_bounds = array<i64: 1, 32>}, {pipeline_mode = #tpu.pipeline_mode<synchronous>, transform_indices = @transform_3, window_bounds = array<i64: 32, 64>}, {transform_indices = @transform_4, window_bounds = array<i64: 1, 16, 64>}]} {
    %c0 = arith.constant 0 : index
    %c0_0 = arith.constant 0 : index
    %c0_1 = arith.constant 0 : index
    %0 = vector.load %arg2[%c0, %c0_0, %c0_1] : memref<1x16x32xf32, #tpu.memory_space<vmem>>, vector<1x16x32xf32>
    %1 = vector.shape_cast %0 : vector<1x16x32xf32> to vector<16x32xf32>
    %c0_2 = arith.constant 0 : index
    %c0_3 = arith.constant 0 : index
    %2 = vector.load %arg3[%c0_2, %c0_3] : memref<1x32xf32, #tpu.memory_space<vmem>>, vector<1x32xf32>
    %3 = vector.shape_cast %2 : vector<1x32xf32> to vector<32xf32>
    %c0_4 = arith.constant 0 : index
    %c0_5 = arith.constant 0 : index
    %4 = vector.load %arg4[%c0_4, %c0_5] : memref<1x32xf32, #tpu.memory_space<vmem>>, vector<1x32xf32>
    %5 = vector.shape_cast %4 : vector<1x32xf32> to vector<32xf32>
    %cst = arith.constant dense<0.000000e+00> : vector<16xf32>
    %6 = vector.multi_reduction <add>, %1, %cst [1] : vector<16x32xf32> to vector<16xf32>
    %7 = vector.shape_cast %6 : vector<16xf32> to vector<16x1xf32>
    %cst_6 = arith.constant 3.200000e+01 : f32
    %8 = vector.broadcast %cst_6 : f32 to vector<16x1xf32>
    %9 = arith.divf %7, %8 : vector<16x1xf32>
    %10 = vector.broadcast %9 : vector<16x1xf32> to vector<16x32xf32>
    %11 = arith.subf %1, %10 : vector<16x32xf32>
    %12 = arith.mulf %11, %11 : vector<16x32xf32>
    %cst_7 = arith.constant dense<0.000000e+00> : vector<16xf32>
    %13 = vector.multi_reduction <add>, %12, %cst_7 [1] : vector<16x32xf32> to vector<16xf32>
    %14 = vector.shape_cast %13 : vector<16xf32> to vector<16x1xf32>
    %cst_8 = arith.constant 3.200000e+01 : f32
    %15 = vector.broadcast %cst_8 : f32 to vector<16x1xf32>
    %16 = arith.divf %14, %15 : vector<16x1xf32>
    %17 = vector.broadcast %9 : vector<16x1xf32> to vector<16x32xf32>
    %18 = arith.subf %1, %17 : vector<16x32xf32>
    %cst_9 = arith.constant 9.99999974E-6 : f32
    %19 = vector.broadcast %cst_9 : f32 to vector<16x1xf32>
    %20 = arith.addf %16, %19 : vector<16x1xf32>
    %21 = math.rsqrt %20 : vector<16x1xf32>
    %22 = vector.broadcast %21 : vector<16x1xf32> to vector<16x32xf32>
    %23 = arith.mulf %18, %22 : vector<16x32xf32>
    %24 = vector.shape_cast %3 : vector<32xf32> to vector<1x32xf32>
    %25 = vector.broadcast %24 : vector<1x32xf32> to vector<16x32xf32>
    %26 = arith.mulf %23, %25 : vector<16x32xf32>
    %27 = vector.shape_cast %5 : vector<32xf32> to vector<1x32xf32>
    %28 = vector.broadcast %27 : vector<1x32xf32> to vector<16x32xf32>
    %29 = arith.addf %26, %28 : vector<16x32xf32>
    %c0_10 = arith.constant 0 : index
    %c0_11 = arith.constant 0 : index
    %30 = vector.load %arg5[%c0_10, %c0_11] : memref<32x64xf32, #tpu.memory_space<vmem>>, vector<32x64xf32>
    %cst_12 = arith.constant dense<0.000000e+00> : vector<16x64xf32>
    %31 = tpu.matmul %29, %30, %cst_12 {dimension_numbers = #tpu.dot_dimension_numbers<[1], [0], [0], [1], [0, 0, 1, 1], [], []>} : vector<16x32xf32>, vector<32x64xf32>, vector<16x64xf32> -> vector<16x64xf32>
    %c0_13 = arith.constant 0 : index
    %c0_14 = arith.constant 0 : index
    %c0_15 = arith.constant 0 : index
    %32 = vector.load %arg6[%c0_13, %c0_14, %c0_15] : memref<1x16x64xf32, #tpu.memory_space<vmem>>, vector<1x16x64xf32>
    %33 = vector.shape_cast %32 : vector<1x16x64xf32> to vector<16x64xf32>
    %34 = vector.shape_cast %31 : vector<16x64xf32> to vector<1x16x64xf32>
    tpu.vector_store %arg6[%c0_13, %c0_14, %c0_15], %34 {strides = array<i32>} : memref<1x16x64xf32, #tpu.memory_space<vmem>>, vector<1x16x64xf32>,
    return
  }
  func.func @transform_0(%arg0: i32, %arg1: i32) -> (i32, i32, i32) {
    %c0_i32 = arith.constant 0 : i32
    %c0_i32_0 = arith.constant 0 : i32
    return %arg0, %arg1, %c0_i32 : i32, i32, i32
  }
  func.func @transform_1(%arg0: i32, %arg1: i32) -> (i32, i32) {
    %c0_i32 = arith.constant 0 : i32
    %c0_i32_0 = arith.constant 0 : i32
    %c0_i32_1 = arith.constant 0 : i32
    return %c0_i32, %c0_i32_0 : i32, i32
  }
  func.func @transform_2(%arg0: i32, %arg1: i32) -> (i32, i32) {
    %c0_i32 = arith.constant 0 : i32
    %c0_i32_0 = arith.constant 0 : i32
    %c0_i32_1 = arith.constant 0 : i32
    return %c0_i32, %c0_i32_0 : i32, i32
  }
  func.func @transform_3(%arg0: i32, %arg1: i32) -> (i32, i32) {
    %c0_i32 = arith.constant 0 : i32
    %c0_i32_0 = arith.constant 0 : i32
    %c0_i32_1 = arith.constant 0 : i32
    return %c0_i32, %c0_i32_0 : i32, i32
  }
  func.func @transform_4(%arg0: i32, %arg1: i32) -> (i32, i32, i32) {
    %c0_i32 = arith.constant 0 : i32
    %c0_i32_0 = arith.constant 0 : i32
    return %arg0, %arg1, %c0_i32 : i32, i32, i32
  }
}

module attributes {stable_mosaic.version = 11 : i64} {
  func.func @_kv_proj_kernel(%arg0: i32, %arg1: i32, %arg2: memref<1x16x32xf32, #tpu.memory_space<vmem>>, %arg3: memref<1x32xf32, #tpu.memory_space<vmem>>, %arg4: memref<1x32xf32, #tpu.memory_space<vmem>>, %arg5: memref<32x64xf32, #tpu.memory_space<vmem>>, %arg6: memref<1x16x64xf32, #tpu.memory_space<vmem>>) attributes {dimension_semantics = [#tpu.dimension_semantics<parallel>, #tpu.dimension_semantics<parallel>], iteration_bounds = array<i64: 2, 1>, scalar_prefetch = 0 : i64, scratch_operands = 0 : i64, tpu.core_type = #tpu.core_type<tc>, window_params = [{transform_indices = @transform_0, window_bounds = array<i64: 1, 16, 32>}, {pipeline_mode = #tpu.pipeline_mode<synchronous>, transform_indices = @transform_1, window_bounds = array<i64: 1, 32>}, {pipeline_mode = #tpu.pipeline_mode<synchronous>, transform_indices = @transform_2, window_bounds = array<i64: 1, 32>}, {pipeline_mode = #tpu.pipeline_mode<synchronous>, transform_indices = @transform_3, window_bounds = array<i64: 32, 64>}, {transform_indices = @transform_4, window_bounds = array<i64: 1, 16, 64>}]} {
    %c0 = arith.constant 0 : index
    %c0_0 = arith.constant 0 : index
    %c0_1 = arith.constant 0 : index
    %0 = vector.load %arg2[%c0, %c0_0, %c0_1] : memref<1x16x32xf32, #tpu.memory_space<vmem>>, vector<1x16x32xf32>
    %1 = vector.shape_cast %0 : vector<1x16x32xf32> to vector<16x32xf32>
    %c0_2 = arith.constant 0 : index
    %c0_3 = arith.constant 0 : index
    %2 = vector.load %arg3[%c0_2, %c0_3] : memref<1x32xf32, #tpu.memory_space<vmem>>, vector<1x32xf32>
    %3 = vector.shape_cast %2 : vector<1x32xf32> to vector<32xf32>
    %c0_4 = arith.constant 0 : index
    %c0_5 = arith.constant 0 : index
    %4 = vector.load %arg4[%c0_4, %c0_5] : memref<1x32xf32, #tpu.memory_space<vmem>>, vector<1x32xf32>
    %5 = vector.shape_cast %4 : vector<1x32xf32> to vector<32xf32>
    %cst = arith.constant dense<0.000000e+00> : vector<16xf32>
    %6 = vector.multi_reduction <add>, %1, %cst [1] : vector<16x32xf32> to vector<16xf32>
    %7 = vector.shape_cast %6 : vector<16xf32> to vector<16x1xf32>
    %cst_6 = arith.constant 3.200000e+01 : f32
    %8 = vector.broadcast %cst_6 : f32 to vector<16x1xf32>
    %9 = arith.divf %7, %8 : vector<16x1xf32>
    %10 = vector.broadcast %9 : vector<16x1xf32> to vector<16x32xf32>
    %11 = arith.subf %1, %10 : vector<16x32xf32>
    %12 = arith.mulf %11, %11 : vector<16x32xf32>
    %cst_7 = arith.constant dense<0.000000e+00> : vector<16xf32>
    %13 = vector.multi_reduction <add>, %12, %cst_7 [1] : vector<16x32xf32> to vector<16xf32>
    %14 = vector.shape_cast %13 : vector<16xf32> to vector<16x1xf32>
    %cst_8 = arith.constant 3.200000e+01 : f32
    %15 = vector.broadcast %cst_8 : f32 to vector<16x1xf32>
    %16 = arith.divf %14, %15 : vector<16x1xf32>
    %17 = vector.broadcast %9 : vector<16x1xf32> to vector<16x32xf32>
    %18 = arith.subf %1, %17 : vector<16x32xf32>
    %cst_9 = arith.constant 9.99999974E-6 : f32
    %19 = vector.broadcast %cst_9 : f32 to vector<16x1xf32>
    %20 = arith.addf %16, %19 : vector<16x1xf32>
    %21 = math.rsqrt %20 : vector<16x1xf32>
    %22 = vector.broadcast %21 : vector<16x1xf32> to vector<16x32xf32>
    %23 = arith.mulf %18, %22 : vector<16x32xf32>
    %24 = vector.shape_cast %3 : vector<32xf32> to vector<1x32xf32>
    %25 = vector.broadcast %24 : vector<1x32xf32> to vector<16x32xf32>
    %26 = arith.mulf %23, %25 : vector<16x32xf32>
    %27 = vector.shape_cast %5 : vector<32xf32> to vector<1x32xf32>
    %28 = vector.broadcast %27 : vector<1x32xf32> to vector<16x32xf32>
    %29 = arith.addf %26, %28 : vector<16x32xf32>
    %c0_10 = arith.constant 0 : index
    %c0_11 = arith.constant 0 : index
    %30 = vector.load %arg5[%c0_10, %c0_11] : memref<32x64xf32, #tpu.memory_space<vmem>>, vector<32x64xf32>
    %cst_12 = arith.constant dense<0.000000e+00> : vector<16x64xf32>
    %31 = tpu.matmul %29, %30, %cst_12 {dimension_numbers = #tpu.dot_dimension_numbers<[1], [0], [0], [1], [0, 0, 1, 1], [], []>} : vector<16x32xf32>, vector<32x64xf32>, vector<16x64xf32> -> vector<16x64xf32>
    %c0_13 = arith.constant 0 : index
    %c0_14 = arith.constant 0 : index
    %c0_15 = arith.constant 0 : index
    %32 = vector.load %arg6[%c0_13, %c0_14, %c0_15] : memref<1x16x64xf32, #tpu.memory_space<vmem>>, vector<1x16x64xf32>
    %33 = vector.shape_cast %32 : vector<1x16x64xf32> to vector<16x64xf32>
    %34 = vector.shape_cast %31 : vector<16x64xf32> to vector<1x16x64xf32>
    tpu.vector_store %arg6[%c0_13, %c0_14, %c0_15], %34 {strides = array<i32>} : memref<1x16x64xf32, #tpu.memory_space<vmem>>, vector<1x16x64xf32>,
    return
  }
  func.func @transform_0(%arg0: i32, %arg1: i32) -> (i32, i32, i32) {
    %c0_i32 = arith.constant 0 : i32
    %c0_i32_0 = arith.constant 0 : i32
    return %arg0, %arg1, %c0_i32 : i32, i32, i32
  }
  func.func @transform_1(%arg0: i32, %arg1: i32) -> (i32, i32) {
    %c0_i32 = arith.constant 0 : i32
    %c0_i32_0 = arith.constant 0 : i32
    %c0_i32_1 = arith.constant 0 : i32
    return %c0_i32, %c0_i32_0 : i32, i32
  }
  func.func @transform_2(%arg0: i32, %arg1: i32) -> (i32, i32) {
    %c0_i32 = arith.constant 0 : i32
    %c0_i32_0 = arith.constant 0 : i32
    %c0_i32_1 = arith.constant 0 : i32
    return %c0_i32, %c0_i32_0 : i32, i32
  }
  func.func @transform_3(%arg0: i32, %arg1: i32) -> (i32, i32) {
    %c0_i32 = arith.constant 0 : i32
    %c0_i32_0 = arith.constant 0 : i32
    %c0_i32_1 = arith.constant 0 : i32
    return %c0_i32, %c0_i32_0 : i32, i32
  }
  func.func @transform_4(%arg0: i32, %arg1: i32) -> (i32, i32, i32) {
    %c0_i32 = arith.constant 0 : i32
    %c0_i32_0 = arith.constant 0 : i32
    return %arg0, %arg1, %c0_i32 : i32, i32, i32
  }
}

</mosaic_0001>

<llo_original>
// kernel: tpu_custom_call.1
$region0: #{tpu_custom_call.1}
  #allocation0 [shape = 'u32[]', space=smem, size = 0x4, offset = 0x4, fixed_abs, tag = 'smem constant byte address 0x4 - core index']
  #allocation1 [shape = 'u32[144,128]{1,0:T(1,128)}', space=vmem, size = 0x12000, scoped, tag = 'internal scratch']
  %s0 = inlined_call_operand.hbm [shape: f32[2,16,32], index: 0, kind: input, shape index: {}]
  %s1 = inlined_call_operand.vmem [shape: f32[1,32], index: 1, kind: input, shape index: {}]
  %s2 = inlined_call_operand.vmem [shape: f32[1,32], index: 2, kind: input, shape index: {}]
  %s3 = inlined_call_operand.hbm [shape: f32[32,64], index: 3, kind: input, shape index: {}]
  %s4 = inlined_call_operand.hbm [shape: f32[2,16,64], index: 4, kind: output, shape index: {}]
  %s5 = sld [smem:[#allocation0]]
  $region57: #{tpu_custom_call.1} parent=0
    _
  %s7 = ssub.s32 1, %s5
  %s8 = scalar_select 0, %s7, %s5
  $region1: #{tpu_custom_call.1} parent=0
    #allocation2 [shape = 'u8[16384]{0}', space=vmem, size = 0x4000, scoped, tag = 'input window, operand 0']
    #allocation3 [shape = 's32[2]{0}', space=sflag, size = 0x8, scoped, tag = 'scoped memory for tpu_custom_call.1']
    #allocation4 [shape = 's32[2]{0}', space=sflag, size = 0x8, scoped, tag = 'scoped memory for tpu_custom_call.1']
    #allocation5 [shape = 'u8[16384]{0}', space=vmem, size = 0x4000, scoped, tag = 'input window, operand 3, single buffered']
    #allocation6 [shape = 's32[1]{0}', space=sflag, size = 0x4, scoped, tag = 'scoped memory for tpu_custom_call.1']
    #allocation7 [shape = 'u8[16384]{0}', space=vmem, size = 0x4000, scoped, tag = 'output window, operand 0']
    %9 = vsyncpa [#allocation3], 0
    %s10 = scalar_lea.sflag [#allocation3], 1
    %11 = vsyncpa %s10, 0
    %12 = vsyncpa [#allocation6], 0
    %13 = vsyncpa [#allocation4], 0
    %s14 = scalar_lea.sflag [#allocation4], 1
    %15 = vsyncpa %s14, 0
    loop: start=0, step=1, limit=4
    $region2: #{tpu_custom_call.1} parent=1 // loop_pre_header
      _
    $region3: #{tpu_custom_call.1} parent=1 // loop_header
      %s17 = sphi 0, %s21
      %p18 = scmp.ge.s32.totalorder %s17, 4
      %s24 = sphi 0, %s36
      %s25 = sphi 0, %s32
      %s26 = sphi 0, %s24
      %s27 = sphi 0, %s25
      %s28 = sphi 0, %s26
      %s29 = sphi 0, %s27
      %s41 = sphi 0, %s43
      %s44 = sphi 0, %s41
      %s45 = sphi 0, %s44
      %s61 = sphi 0, %s45
      %s65 = sphi 0, %s65
      %s67 = sphi 0, %s65
      %s68 = sphi 0, %s67
      %s82 = sphi 0, %s68
      %s86 = sphi 0, %s86
      %s88 = sphi 0, %s86
      %s89 = sphi 0, %s88
      %s103 = sphi 0, %s89
      %s107 = sphi 0, %s107
      %s109 = sphi 0, %s107
      %s110 = sphi 0, %s109
      %s124 = sphi 0, %s110
      %s132 = sphi 0, %s134
      %s135 = sphi 0, %s132
      %s136 = sphi 0, %s135
      %s152 = sphi 0, %s136
    $region4: #{tpu_custom_call.1} parent=1 // loop_header_branch
      %20 = sbr.rel (%p18) target = $region8
    $region5: #{tpu_custom_call.1} parent=1 // loop_body
      %s22 = ssub.s32 %s17, 1
      %s23 = ssub.s32 %s17, 2
      %s30 = sadd.s32 1, %s25
      %p31 = scmp.ge.s32.totalorder %s30, 1
      %s32 = scalar_select %p31, 0, %s30
      %s33 = sadd.s32 1, %s24
      %s34 = scalar_select %p31, %s33, %s24
      %p35 = scmp.ge.s32.totalorder %s34, 2
      %s36 = scalar_select %p35, 0, %s34
      %s37 = ssub.s32 %s24, %s36
      %s38 = ssub.s32 %s25, %s32
      %s39 = sor.u32 %s37, %s38
      %p40 = scmp.eq.s32.totalorder %s39, 0
      %s42 = sadd.s32 %s41, 1
      %s43 = scalar_select %p40, %s41, %s42
      %p46 = pneg %p40
      %p47 = scmp.eq.s32.totalorder %s17, 1
      %p48 = por %p46, %p47
      %p49 = scmp.ne.s32.totalorder %s41, %s44
      %p50 = scmp.eq.s32.totalorder %s17, 0
      %p51 = por %p49, %p50
      %p52 = scmp.ne.s32.totalorder %s41, %s44
      %p53 = scmp.eq.s32.totalorder %s22, 1
      %p54 = por %p52, %p53
      %p55 = scmp.ne.s32.totalorder %s44, %s45
      %p56 = scmp.eq.s32.totalorder %s22, 0
      %p57 = por %p55, %p56
      %p58 = scmp.ne.s32.totalorder %s44, %s45
      %p59 = scmp.eq.s32.totalorder %s23, 1
      %p60 = por %p58, %p59
      %p62 = scmp.ne.s32.totalorder %s45, %s61
      %p63 = scmp.eq.s32.totalorder %s23, 0
      %p64 = por %p62, %p63
      %s66 = sadd.s32 %s65, 1
      %p69 = scmp.eq.s32.totalorder %s17, 1
      %p70 = scmp.ne.s32.totalorder %s65, %s67
      %p71 = scmp.eq.s32.totalorder %s17, 0
      %p72 = por %p70, %p71
      %p73 = scmp.ne.s32.totalorder %s65, %s67
      %p74 = scmp.eq.s32.totalorder %s22, 1
      %p75 = por %p73, %p74
      %p76 = scmp.ne.s32.totalorder %s67, %s68
      %p77 = scmp.eq.s32.totalorder %s22, 0
      %p78 = por %p76, %p77
      %p79 = scmp.ne.s32.totalorder %s67, %s68
      %p80 = scmp.eq.s32.totalorder %s23, 1
      %p81 = por %p79, %p80
      %p83 = scmp.ne.s32.totalorder %s68, %s82
      %p84 = scmp.eq.s32.totalorder %s23, 0
      %p85 = por %p83, %p84
      %s87 = sadd.s32 %s86, 1
      %p90 = scmp.eq.s32.totalorder %s17, 1
      %p91 = scmp.ne.s32.totalorder %s86, %s88
      %p92 = scmp.eq.s32.totalorder %s17, 0
      %p93 = por %p91, %p92
      %p94 = scmp.ne.s32.totalorder %s86, %s88
      %p95 = scmp.eq.s32.totalorder %s22, 1
      %p96 = por %p94, %p95
      %p97 = scmp.ne.s32.totalorder %s88, %s89
      %p98 = scmp.eq.s32.totalorder %s22, 0
      %p99 = por %p97, %p98
      %p100 = scmp.ne.s32.totalorder %s88, %s89
      %p101 = scmp.eq.s32.totalorder %s23, 1
      %p102 = por %p100, %p101
      %p104 = scmp.ne.s32.totalorder %s89, %s103
      %p105 = scmp.eq.s32.totalorder %s23, 0
      %p106 = por %p104, %p105
      %s108 = sadd.s32 %s107, 1
      %p111 = scmp.eq.s32.totalorder %s17, 1
      %p112 = scmp.ne.s32.totalorder %s107, %s109
      %p113 = scmp.eq.s32.totalorder %s17, 0
      %p114 = por %p112, %p113
      %p115 = scmp.ne.s32.totalorder %s107, %s109
      %p116 = scmp.eq.s32.totalorder %s22, 1
      %p117 = por %p115, %p116
      %p118 = scmp.ne.s32.totalorder %s109, %s110
      %p119 = scmp.eq.s32.totalorder %s22, 0
      %p120 = por %p118, %p119
      %p121 = scmp.ne.s32.totalorder %s109, %s110
      %p122 = scmp.eq.s32.totalorder %s23, 1
      %p123 = por %p121, %p122
      %p125 = scmp.ne.s32.totalorder %s110, %s124
      %p126 = scmp.eq.s32.totalorder %s23, 0
      %p127 = por %p125, %p126
      %s128 = ssub.s32 %s24, %s36
      %s129 = ssub.s32 %s25, %s32
      %s130 = sor.u32 %s128, %s129
      %p131 = scmp.eq.s32.totalorder %s130, 0
      %s133 = sadd.s32 %s132, 1
      %s134 = scalar_select %p131, %s132, %s133
      %p137 = pneg %p131
      %p138 = scmp.eq.s32.totalorder %s17, 1
      %p139 = por %p137, %p138
      %p140 = scmp.ne.s32.totalorder %s132, %s135
      %p141 = scmp.eq.s32.totalorder %s17, 0
      %p142 = por %p140, %p141
      %p143 = scmp.ne.s32.totalorder %s132, %s135
      %p144 = scmp.eq.s32.totalorder %s22, 1
      %p145 = por %p143, %p144
      %p146 = scmp.ne.s32.totalorder %s135, %s136
      %p147 = scmp.eq.s32.totalorder %s22, 0
      %p148 = por %p146, %p147
      %p149 = scmp.ne.s32.totalorder %s135, %s136
      %p150 = scmp.eq.s32.totalorder %s23, 1
      %p151 = por %p149, %p150
      %p153 = scmp.ne.s32.totalorder %s136, %s152
      %p154 = scmp.eq.s32.totalorder %s23, 0
      %p155 = por %p153, %p154
      %p156 = scmp.le.s32.totalorder 1, %s17
      %p157 = scmp.lt.s32.totalorder %s17, 3
      %p158 = pnand %p156, %p157
      %p159 = pneg %p158
      // Predicated region
      $region9: #{tpu_custom_call.1} parent=5 // pred_check
        _
      $region10: #{tpu_custom_call.1} parent=5 // pred_check_branch
        %161 = sbr.rel (%p158) target = $region12
      $region11: #{tpu_custom_call.1} parent=5 // pred_region
        %s162 = ssub.s32 %s17, 1
        // Predicated region
        $region13: #{tpu_custom_call.1} parent=11 // pred_check
          %p163 = pneg %p78
        $region14: #{tpu_custom_call.1} parent=11 // pred_check_branch
          %165 = sbr.rel (%p163) target = $region16
        $region15: #{tpu_custom_call.1} parent=11 // pred_region
          _
        $region16: #{tpu_custom_call.1} parent=11 // pred_fallthru
          _
        // Predicated region
        $region17: #{tpu_custom_call.1} parent=11 // pred_check
          %p166 = pneg %p99
        $region18: #{tpu_custom_call.1} parent=11 // pred_check_branch
          %168 = sbr.rel (%p166) target = $region20
        $region19: #{tpu_custom_call.1} parent=11 // pred_region
          _
        $region20: #{tpu_custom_call.1} parent=11 // pred_fallthru
          _
        // Predicated region
        $region21: #{tpu_custom_call.1} parent=11 // pred_check
          %p169 = pneg %p120
        $region22: #{tpu_custom_call.1} parent=11 // pred_check_branch
          %171 = sbr.rel (%p169) target = $region24
        $region23: #{tpu_custom_call.1} parent=11 // pred_region
          %s173 = ssub.s32 512, 512
          %174 = vsyncadd [#allocation6], %s173
          %s175 = sshll.u32 [#allocation5], 4
          %s176 = int_to_ptr.vmem [resolvable:$true] %s175
          %181 = dma.hbm_to_vmem [thread:$0]  %s3, 512, %s176, [#allocation6], 128, 128, 8
        $region24: #{tpu_custom_call.1} parent=11 // pred_fallthru
          _
      $region12: #{tpu_custom_call.1} parent=5 // pred_fallthru
        _
      %p182 = scmp.lt.s32.totalorder %s17, 2
      // Predicated region
      $region25: #{tpu_custom_call.1} parent=5 // pred_check
        %p183 = pneg %p182
      $region26: #{tpu_custom_call.1} parent=5 // pred_check_branch
        %185 = sbr.rel (%p183) target = $region28
      $region27: #{tpu_custom_call.1} parent=5 // pred_region
        // Predicated region
        $region29: #{tpu_custom_call.1} parent=27 // pred_check
          %p186 = pneg %p51
        $region30: #{tpu_custom_call.1} parent=27 // pred_check_branch
          %188 = sbr.rel (%p186) target = $region32
        $region31: #{tpu_custom_call.1} parent=27 // pred_region
          %s189 = sand.u32 %s41, 1
          %s190 = scalar_lea.sflag [#allocation3], %s189
          %s191 = sand.u32 %s41, 1
          %s192 = smul.addr %s191, 16
          %s193 = scalar_lea.vmem [#allocation2], %s192
          %s194 = smul.u32 2, %s25
          %s196 = ssub.s32 256, 256
          %197 = vsyncadd %s190, %s196
          %s198 = smul.addr %s24, 2
          %s199 = sadd.s32 %s194, %s198
          %s200 = smul.addr %s199, 128
          %s201 = scalar_lea.hbm %s0, %s200
          %s202 = sshll.u32 %s193, 4
          %s203 = int_to_ptr.vmem [resolvable:$true] %s202
          %208 = dma.hbm_to_vmem [thread:$0]  %s201, 256, %s203, %s190, 128, 128, 8
        $region32: #{tpu_custom_call.1} parent=27 // pred_fallthru
          _
      $region28: #{tpu_custom_call.1} parent=5 // pred_fallthru
        _
      %p209 = scmp.le.s32.totalorder 1, %s17
      %p210 = scmp.lt.s32.totalorder %s17, 3
      %p211 = pnand %p209, %p210
      %p212 = pneg %p211
      // Predicated region
      $region33: #{tpu_custom_call.1} parent=5 // pred_check
        _
      $region34: #{tpu_custom_call.1} parent=5 // pred_check_branch
        %214 = sbr.rel (%p211) target = $region36
      $region35: #{tpu_custom_call.1} parent=5 // pred_region
        %s215 = ssub.s32 %s17, 1
        %s216 = sand.u32 %s44, 1
        %s217 = scalar_lea.sflag [#allocation3], %s216
        %s218 = sand.u32 %s44, 1
        %s219 = smul.addr %s218, 16
        %s220 = scalar_lea.vmem [#allocation2], %s219
        // Predicated region
        $region37: #{tpu_custom_call.1} parent=35 // pred_check
          %p221 = pneg %p57
        $region38: #{tpu_custom_call.1} parent=35 // pred_check_branch
          %223 = sbr.rel (%p221) target = $region40
        $region39: #{tpu_custom_call.1} parent=35 // pred_region
          %224 = dma.done %s217, 256
        $region40: #{tpu_custom_call.1} parent=35 // pred_fallthru
          _
        // Predicated region
        $region41: #{tpu_custom_call.1} parent=35 // pred_check
          %p225 = pneg %p120
        $region42: #{tpu_custom_call.1} parent=35 // pred_check_branch
          %227 = sbr.rel (%p225) target = $region44
        $region43: #{tpu_custom_call.1} parent=35 // pred_region
          %228 = dma.done [#allocation6], 512
        $region44: #{tpu_custom_call.1} parent=35 // pred_fallthru
          _
        %s229 = sand.u32 %s44, 1
        %s230 = scalar_lea.sflag [#allocation3], %s229
        %s231 = sand.u32 %s44, 1
        %s232 = smul.addr %s231, 16
        %s233 = scalar_lea.vmem [#allocation2], %s232
        %p234 = pneg %p57
        %p235 = pneg %p54
        %p236 = pneg %p78
        %p237 = pneg %p75
        %p238 = pneg %p99
        %p239 = pneg %p96
        %p240 = pneg %p120
        %p241 = pneg %p117
        %p242 = pneg %p148
        %p243 = pneg %p145
        %s244 = sand.u32 %s135, 1
        %s245 = scalar_lea.sflag [#allocation4], %s244
        %s246 = sand.u32 %s135, 1
        %s247 = smul.addr %s246, 16
        %s248 = scalar_lea.vmem [#allocation7], %s247
        %s249 = smul.u32 2, %s27
        %s250 = smul.u32 2, %s27
        %v251 = vld [vmem:[%s220] sm:$0xff]
        %v252 = vld [vmem:[%s220 + $0x8] sm:$0xff]
        %v253 = vld [vmem:[%s1] sm:$0x1]
        %v254 = vld [vmem:[%s2] sm:$0x1]
        %vm255 = vcmask 261120
        %v256 = vsel %vm255, %v251, 0.0
        %257 = vadd.xlane.f32.xlu0 %v256
        %v258 = vpop.xlane.xlu0 %257
        %v259 = vsel %vm255, %v252, 0.0
        %260 = vadd.xlane.f32.xlu0 %v259
        %v261 = vpop.xlane.xlu0 %260
        %v262 = vrcp.pop 32.0
        %v263 = vmul.f32 %v258, %v262
        %v264 = vmul.f32 %v261, %v262
        %v265 = vsub.f32 %v251, %v263
        %v266 = vsub.f32 %v252, %v264
        %v267 = vmul.f32 %v265, %v265
        %v268 = vmul.f32 %v266, %v266
        %v269 = vsel %vm255, %v267, 0.0
        %270 = vadd.xlane.f32.xlu0 %v269
        %v271 = vpop.xlane.xlu0 %270
        %v272 = vsel %vm255, %v268, 0.0
        %273 = vadd.xlane.f32.xlu0 %v272
        %v274 = vpop.xlane.xlu0 %273
        %v275 = vmul.f32 %v271, %v262
        %v276 = vmul.f32 %v274, %v262
        %v277 = vadd.f32 %v275, 1e-05
        %v278 = vadd.f32 %v276, 1e-05
        %v279 = vrsqrt.pop %v277
        %v280 = vrsqrt.pop %v278
        %v281 = vmul.f32 %v265, %v279
        %v282 = vmul.f32 %v266, %v280
        %v284 = vlaneseq
        %v285 = vshrl.u32 %v284, 7
        %v286 = vsub.s32 0, %v285
        %v287 = vrot.slane %v253, %v286
        %v289 = vmul.f32 %v281, %v287
        %v290 = vmul.f32 %v282, %v287
        %v292 = vlaneseq
        %v293 = vshrl.u32 %v292, 7
        %v294 = vsub.s32 0, %v293
        %v295 = vrot.slane %v254, %v294
        %v297 = vadd.f32 %v289, %v295
        %v298 = vadd.f32 %v290, %v295
        %v299 = vld [vmem:[#allocation5] sm:$0xff]
        %v300 = vld [vmem:[#allocation5 + $0x8] sm:$0xff]
        %v301 = vld [vmem:[#allocation5 + $0x10] sm:$0xff]
        %v302 = vld [vmem:[#allocation5 + $0x18] sm:$0xff]
        %v304 = vsel %vm255, %v297, 0
        %v307 = vsel %vm255, %v298, 0
        %309 = vmatprep.subr.mxu0 0.0
        %310 = vmatpush1.msra.mxu0 %v299
        %311 = vmatprep.subr.mxu0 0.0
        %312 = vmatpush1.msra.mxu0 %v300
        %313 = vmatprep.subr.mxu0 0.0
        %314 = vmatpush1.msra.mxu0 %v301
        %315 = vmatprep.subr.mxu0 0.0
        %316 = vmatpush1.msra.mxu0 %v302
        %317 = vmatprep.subr.mxu0 0.0
        %318 = vmatpush1.msra.mxu0 0.0
        %319 = vmatprep.subr.mxu0 0.0
        %320 = vmatpush1.msra.mxu0 0.0
        %321 = vmatprep.subr.mxu0 0.0
        %322 = vmatpush1.msra.mxu0 0.0
        %323 = vmatprep.subr.mxu0 0.0
        %324 = vmatpush1.msra.mxu0 0.0
        %325 = vmatprep.subr.mxu0 0.0
        %326 = vmatpush1.msra.mxu0 0.0
        %327 = vmatprep.subr.mxu0 0.0
        %328 = vmatpush1.msra.mxu0 0.0
        %329 = vmatprep.subr.mxu0 0.0
        %330 = vmatpush1.msra.mxu0 0.0
        %331 = vmatprep.subr.mxu0 0.0
        %332 = vmatpush1.msra.mxu0 0.0
        %333 = vmatprep.subr.mxu0 0.0
        %334 = vmatpush1.msra.mxu0 0.0
        %335 = vmatprep.subr.mxu0 0.0
        %336 = vmatpush1.msra.mxu0 0.0
        %337 = vmatprep.subr.mxu0 0.0
        %338 = vmatpush1.msra.mxu0 0.0
        %339 = vmatprep.subr.mxu0 0.0
        %340 = vmatpush1.msra.mxu0 0.0
        %341 = vmatprep.subr.mxu0 0.0
        %342 = vmatpush1.msra.mxu0 0.0
        %343 = vmatprep.subr.mxu0 0.0
        %344 = vmatpush1.msra.mxu0 0.0
        %345 = vmatprep.subr.mxu0 0.0
        %346 = vmatpush1.msra.mxu0 0.0
        %347 = vmatprep.subr.mxu0 0.0
        %348 = vmatpush1.msra.mxu0 0.0
        %349 = vmatprep.subr.mxu0 0.0
        %350 = vmatpush1.msra.mxu0 0.0
        %351 = vmatprep.subr.mxu0 0.0
        %352 = vmatpush1.msra.mxu0 0.0
        %353 = vmatprep.subr.mxu0 0.0
        %354 = vmatpush1.msra.mxu0 0.0
        %355 = vmatprep.subr.mxu0 0.0
        %356 = vmatpush1.msra.mxu0 0.0
        %357 = vmatprep.subr.mxu0 0.0
        %358 = vmatpush1.msra.mxu0 0.0
        %359 = vmatprep.subr.mxu0 0.0
        %360 = vmatpush1.msra.mxu0 0.0
        %361 = vmatprep.subr.mxu0 0.0
        %362 = vmatpush1.msra.mxu0 0.0
        %363 = vmatprep.subr.mxu0 0.0
        %364 = vmatpush1.msra.mxu0 0.0
        %365 = vmatprep.subr.mxu0 0.0
        %366 = vmatpush1.msra.mxu0 0.0
        %367 = vmatprep.subr.mxu0 0.0
        %368 = vmatpush1.msra.mxu0 0.0
        %369 = vmatprep.subr.mxu0 0.0
        %370 = vmatpush1.msra.mxu0 0.0
        %371 = vmatprep.subr.mxu0 0.0
        %372 = vmatpush1.msra.mxu0 0.0
        %373 = vmatprep.mubr.f32.mxu0 0.0
        %374 = vmatmul.mubr.f32.gmra.mrb[0].mxu0 %v304
        %v375 = vpop.f32.mrb[0].mxu0
        %v376 = vadd.f32 0.0, %v375
        %v377 = vpop.f32.mrb[0].mxu0
        %378 = vmatprep.mubr.f32.mxu0 0.0
        %379 = vmatmul.mubr.f32.gmra.mrb[0].mxu0 %v307
        %v380 = vpop.f32.mrb[0].mxu0
        %v381 = vadd.f32 0.0, %v380
        %v382 = vpop.f32.mrb[0].mxu0
        %383 = vdwg.mxu0
        %vm384 = vcmask 523264
        %385 = vst.msk [vmem:[%s248] sm:$0xff] %vm384, %v376
        %386 = vst.msk [vmem:[%s248 + $0x8] sm:$0xff] %vm384, %v381
        %s387 = sand.u32 %s135, 1
        %s388 = scalar_lea.sflag [#allocation4], %s387
        %s389 = sand.u32 %s135, 1
        %s390 = smul.addr %s389, 16
        %s391 = scalar_lea.vmem [#allocation7], %s390
        // Predicated region
        $region45: #{tpu_custom_call.1} parent=35 // pred_check
          %p392 = pneg %p145
        $region46: #{tpu_custom_call.1} parent=35 // pred_check_branch
          %394 = sbr.rel (%p392) target = $region48
        $region47: #{tpu_custom_call.1} parent=35 // pred_region
          %s395 = smul.u32 2, %s27
          %s397 = ssub.s32 256, 256
          %398 = vsyncadd %s388, %s397
          %s399 = smul.addr %s26, 2
          %s400 = sadd.s32 %s395, %s399
          %s401 = smul.addr %s400, 128
          %s402 = scalar_lea.hbm %s4, %s401
          %s403 = sshll.u32 %s391, 4
          %s404 = int_to_ptr.vmem [resolvable:$true] %s403
          %409 = dma.vmem_to_hbm [thread:$0]  %s404, 256, %s402, %s388, 128, 128, 8
        $region48: #{tpu_custom_call.1} parent=35 // pred_fallthru
          _
      $region36: #{tpu_custom_call.1} parent=5 // pred_fallthru
        _
      %p410 = scmp.le.s32.totalorder 2, %s17
      // Predicated region
      $region49: #{tpu_custom_call.1} parent=5 // pred_check
        %p411 = pneg %p410
      $region50: #{tpu_custom_call.1} parent=5 // pred_check_branch
        %413 = sbr.rel (%p411) target = $region52
      $region51: #{tpu_custom_call.1} parent=5 // pred_region
        %s414 = ssub.s32 %s17, 2
        // Predicated region
        $region53: #{tpu_custom_call.1} parent=51 // pred_check
          %p415 = pneg %p151
        $region54: #{tpu_custom_call.1} parent=51 // pred_check_branch
          %417 = sbr.rel (%p415) target = $region56
        $region55: #{tpu_custom_call.1} parent=51 // pred_region
          %s418 = sand.u32 %s136, 1
          %s419 = scalar_lea.sflag [#allocation4], %s418
          %s420 = sand.u32 %s136, 1
          %s421 = smul.addr %s420, 16
          %s422 = scalar_lea.vmem [#allocation7], %s421
          %423 = dma.done %s419, 256
        $region56: #{tpu_custom_call.1} parent=51 // pred_fallthru
          _
      $region52: #{tpu_custom_call.1} parent=5 // pred_fallthru
        _
    $region6: #{tpu_custom_call.1} parent=1 // loop_footer
      %s21 = sadd.s32 1, %s17
    $region7: #{tpu_custom_call.1} parent=1 // loop_footer_branch
      %16 = sbr.rel target = $region3
    $region8: #{tpu_custom_call.1} parent=1 // loop_exit
      _
    %424 = vsyncpa [#allocation3], 1
    %s425 = scalar_lea.sflag [#allocation3], 1
    %426 = vsyncpa %s425, 1
    %427 = vsyncpa [#allocation6], 1
    %428 = vsyncpa [#allocation4], 1
    %s429 = scalar_lea.sflag [#allocation4], 1
    %430 = vsyncpa %s429, 1

// kernel: tpu_custom_call.1
$region0: #{tpu_custom_call.1}
  #allocation0 [shape = 'u32[]', space=smem, size = 0x4, offset = 0x4, fixed_abs, tag = 'smem constant byte address 0x4 - core index']
  #allocation1 [shape = 'u32[144,128]{1,0:T(1,128)}', space=vmem, size = 0x12000, scoped, tag = 'internal scratch']
  %s0 = inlined_call_operand.hbm [shape: f32[2,16,32], index: 0, kind: input, shape index: {}]
  %s1 = inlined_call_operand.vmem [shape: f32[1,32], index: 1, kind: input, shape index: {}]
  %s2 = inlined_call_operand.vmem [shape: f32[1,32], index: 2, kind: input, shape index: {}]
  %s3 = inlined_call_operand.hbm [shape: f32[32,64], index: 3, kind: input, shape index: {}]
  %s4 = inlined_call_operand.hbm [shape: f32[2,16,64], index: 4, kind: output, shape index: {}]
  %s5 = sld [smem:[#allocation0]]
  $region57: #{tpu_custom_call.1} parent=0
    _
  %s7 = ssub.s32 1, %s5
  %s8 = scalar_select 0, %s7, %s5
  $region1: #{tpu_custom_call.1} parent=0
    #allocation2 [shape = 'u8[16384]{0}', space=vmem, size = 0x4000, scoped, tag = 'input window, operand 0']
    #allocation3 [shape = 's32[2]{0}', space=sflag, size = 0x8, scoped, tag = 'scoped memory for tpu_custom_call.1']
    #allocation4 [shape = 's32[2]{0}', space=sflag, size = 0x8, scoped, tag = 'scoped memory for tpu_custom_call.1']
    #allocation5 [shape = 'u8[16384]{0}', space=vmem, size = 0x4000, scoped, tag = 'input window, operand 3, single buffered']
    #allocation6 [shape = 's32[1]{0}', space=sflag, size = 0x4, scoped, tag = 'scoped memory for tpu_custom_call.1']
    #allocation7 [shape = 'u8[16384]{0}', space=vmem, size = 0x4000, scoped, tag = 'output window, operand 0']
    %9 = vsyncpa [#allocation3], 0
    %s10 = scalar_lea.sflag [#allocation3], 1
    %11 = vsyncpa %s10, 0
    %12 = vsyncpa [#allocation6], 0
    %13 = vsyncpa [#allocation4], 0
    %s14 = scalar_lea.sflag [#allocation4], 1
    %15 = vsyncpa %s14, 0
    loop: start=0, step=1, limit=4
    $region2: #{tpu_custom_call.1} parent=1 // loop_pre_header
      _
    $region3: #{tpu_custom_call.1} parent=1 // loop_header
      %s17 = sphi 0, %s21
      %p18 = scmp.ge.s32.totalorder %s17, 4
      %s24 = sphi 0, %s36
      %s25 = sphi 0, %s32
      %s26 = sphi 0, %s24
      %s27 = sphi 0, %s25
      %s28 = sphi 0, %s26
      %s29 = sphi 0, %s27
      %s41 = sphi 0, %s43
      %s44 = sphi 0, %s41
      %s45 = sphi 0, %s44
      %s61 = sphi 0, %s45
      %s65 = sphi 0, %s65
      %s67 = sphi 0, %s65
      %s68 = sphi 0, %s67
      %s82 = sphi 0, %s68
      %s86 = sphi 0, %s86
      %s88 = sphi 0, %s86
      %s89 = sphi 0, %s88
      %s103 = sphi 0, %s89
      %s107 = sphi 0, %s107
      %s109 = sphi 0, %s107
      %s110 = sphi 0, %s109
      %s124 = sphi 0, %s110
      %s132 = sphi 0, %s134
      %s135 = sphi 0, %s132
      %s136 = sphi 0, %s135
      %s152 = sphi 0, %s136
    $region4: #{tpu_custom_call.1} parent=1 // loop_header_branch
      %20 = sbr.rel (%p18) target = $region8
    $region5: #{tpu_custom_call.1} parent=1 // loop_body
      %s22 = ssub.s32 %s17, 1
      %s23 = ssub.s32 %s17, 2
      %s30 = sadd.s32 1, %s25
      %p31 = scmp.ge.s32.totalorder %s30, 1
      %s32 = scalar_select %p31, 0, %s30
      %s33 = sadd.s32 1, %s24
      %s34 = scalar_select %p31, %s33, %s24
      %p35 = scmp.ge.s32.totalorder %s34, 2
      %s36 = scalar_select %p35, 0, %s34
      %s37 = ssub.s32 %s24, %s36
      %s38 = ssub.s32 %s25, %s32
      %s39 = sor.u32 %s37, %s38
      %p40 = scmp.eq.s32.totalorder %s39, 0
      %s42 = sadd.s32 %s41, 1
      %s43 = scalar_select %p40, %s41, %s42
      %p46 = pneg %p40
      %p47 = scmp.eq.s32.totalorder %s17, 1
      %p48 = por %p46, %p47
      %p49 = scmp.ne.s32.totalorder %s41, %s44
      %p50 = scmp.eq.s32.totalorder %s17, 0
      %p51 = por %p49, %p50
      %p52 = scmp.ne.s32.totalorder %s41, %s44
      %p53 = scmp.eq.s32.totalorder %s22, 1
      %p54 = por %p52, %p53
      %p55 = scmp.ne.s32.totalorder %s44, %s45
      %p56 = scmp.eq.s32.totalorder %s22, 0
      %p57 = por %p55, %p56
      %p58 = scmp.ne.s32.totalorder %s44, %s45
      %p59 = scmp.eq.s32.totalorder %s23, 1
      %p60 = por %p58, %p59
      %p62 = scmp.ne.s32.totalorder %s45, %s61
      %p63 = scmp.eq.s32.totalorder %s23, 0
      %p64 = por %p62, %p63
      %s66 = sadd.s32 %s65, 1
      %p69 = scmp.eq.s32.totalorder %s17, 1
      %p70 = scmp.ne.s32.totalorder %s65, %s67
      %p71 = scmp.eq.s32.totalorder %s17, 0
      %p72 = por %p70, %p71
      %p73 = scmp.ne.s32.totalorder %s65, %s67
      %p74 = scmp.eq.s32.totalorder %s22, 1
      %p75 = por %p73, %p74
      %p76 = scmp.ne.s32.totalorder %s67, %s68
      %p77 = scmp.eq.s32.totalorder %s22, 0
      %p78 = por %p76, %p77
      %p79 = scmp.ne.s32.totalorder %s67, %s68
      %p80 = scmp.eq.s32.totalorder %s23, 1
      %p81 = por %p79, %p80
      %p83 = scmp.ne.s32.totalorder %s68, %s82
      %p84 = scmp.eq.s32.totalorder %s23, 0
      %p85 = por %p83, %p84
      %s87 = sadd.s32 %s86, 1
      %p90 = scmp.eq.s32.totalorder %s17, 1
      %p91 = scmp.ne.s32.totalorder %s86, %s88
      %p92 = scmp.eq.s32.totalorder %s17, 0
      %p93 = por %p91, %p92
      %p94 = scmp.ne.s32.totalorder %s86, %s88
      %p95 = scmp.eq.s32.totalorder %s22, 1
      %p96 = por %p94, %p95
      %p97 = scmp.ne.s32.totalorder %s88, %s89
      %p98 = scmp.eq.s32.totalorder %s22, 0
      %p99 = por %p97, %p98
      %p100 = scmp.ne.s32.totalorder %s88, %s89
      %p101 = scmp.eq.s32.totalorder %s23, 1
      %p102 = por %p100, %p101
      %p104 = scmp.ne.s32.totalorder %s89, %s103
      %p105 = scmp.eq.s32.totalorder %s23, 0
      %p106 = por %p104, %p105
      %s108 = sadd.s32 %s107, 1
      %p111 = scmp.eq.s32.totalorder %s17, 1
      %p112 = scmp.ne.s32.totalorder %s107, %s109
      %p113 = scmp.eq.s32.totalorder %s17, 0
      %p114 = por %p112, %p113
      %p115 = scmp.ne.s32.totalorder %s107, %s109
      %p116 = scmp.eq.s32.totalorder %s22, 1
      %p117 = por %p115, %p116
      %p118 = scmp.ne.s32.totalorder %s109, %s110
      %p119 = scmp.eq.s32.totalorder %s22, 0
      %p120 = por %p118, %p119
      %p121 = scmp.ne.s32.totalorder %s109, %s110
      %p122 = scmp.eq.s32.totalorder %s23, 1
      %p123 = por %p121, %p122
      %p125 = scmp.ne.s32.totalorder %s110, %s124
      %p126 = scmp.eq.s32.totalorder %s23, 0
      %p127 = por %p125, %p126
      %s128 = ssub.s32 %s24, %s36
      %s129 = ssub.s32 %s25, %s32
      %s130 = sor.u32 %s128, %s129
      %p131 = scmp.eq.s32.totalorder %s130, 0
      %s133 = sadd.s32 %s132, 1
      %s134 = scalar_select %p131, %s132, %s133
      %p137 = pneg %p131
      %p138 = scmp.eq.s32.totalorder %s17, 1
      %p139 = por %p137, %p138
      %p140 = scmp.ne.s32.totalorder %s132, %s135
      %p141 = scmp.eq.s32.totalorder %s17, 0
      %p142 = por %p140, %p141
      %p143 = scmp.ne.s32.totalorder %s132, %s135
      %p144 = scmp.eq.s32.totalorder %s22, 1
      %p145 = por %p143, %p144
      %p146 = scmp.ne.s32.totalorder %s135, %s136
      %p147 = scmp.eq.s32.totalorder %s22, 0
      %p148 = por %p146, %p147
      %p149 = scmp.ne.s32.totalorder %s135, %s136
      %p150 = scmp.eq.s32.totalorder %s23, 1
      %p151 = por %p149, %p150
      %p153 = scmp.ne.s32.totalorder %s136, %s152
      %p154 = scmp.eq.s32.totalorder %s23, 0
      %p155 = por %p153, %p154
      %p156 = scmp.le.s32.totalorder 1, %s17
      %p157 = scmp.lt.s32.totalorder %s17, 3
      %p158 = pnand %p156, %p157
      %p159 = pneg %p158
      // Predicated region
      $region9: #{tpu_custom_call.1} parent=5 // pred_check
        _
      $region10: #{tpu_custom_call.1} parent=5 // pred_check_branch
        %161 = sbr.rel (%p158) target = $region12
      $region11: #{tpu_custom_call.1} parent=5 // pred_region
        %s162 = ssub.s32 %s17, 1
        // Predicated region
        $region13: #{tpu_custom_call.1} parent=11 // pred_check
          %p163 = pneg %p78
        $region14: #{tpu_custom_call.1} parent=11 // pred_check_branch
          %165 = sbr.rel (%p163) target = $region16
        $region15: #{tpu_custom_call.1} parent=11 // pred_region
          _
        $region16: #{tpu_custom_call.1} parent=11 // pred_fallthru
          _
        // Predicated region
        $region17: #{tpu_custom_call.1} parent=11 // pred_check
          %p166 = pneg %p99
        $region18: #{tpu_custom_call.1} parent=11 // pred_check_branch
          %168 = sbr.rel (%p166) target = $region20
        $region19: #{tpu_custom_call.1} parent=11 // pred_region
          _
        $region20: #{tpu_custom_call.1} parent=11 // pred_fallthru
          _
        // Predicated region
        $region21: #{tpu_custom_call.1} parent=11 // pred_check
          %p169 = pneg %p120
        $region22: #{tpu_custom_call.1} parent=11 // pred_check_branch
          %171 = sbr.rel (%p169) target = $region24
        $region23: #{tpu_custom_call.1} parent=11 // pred_region
          %s173 = ssub.s32 512, 512
          %174 = vsyncadd [#allocation6], %s173
          %s175 = sshll.u32 [#allocation5], 4
          %s176 = int_to_ptr.vmem [resolvable:$true] %s175
          %181 = dma.hbm_to_vmem [thread:$0]  %s3, 512, %s176, [#allocation6], 128, 128, 8
        $region24: #{tpu_custom_call.1} parent=11 // pred_fallthru
          _
      $region12: #{tpu_custom_call.1} parent=5 // pred_fallthru
        _
      %p182 = scmp.lt.s32.totalorder %s17, 2
      // Predicated region
      $region25: #{tpu_custom_call.1} parent=5 // pred_check
        %p183 = pneg %p182
      $region26: #{tpu_custom_call.1} parent=5 // pred_check_branch
        %185 = sbr.rel (%p183) target = $region28
      $region27: #{tpu_custom_call.1} parent=5 // pred_region
        // Predicated region
        $region29: #{tpu_custom_call.1} parent=27 // pred_check
          %p186 = pneg %p51
        $region30: #{tpu_custom_call.1} parent=27 // pred_check_branch
          %188 = sbr.rel (%p186) target = $region32
        $region31: #{tpu_custom_call.1} parent=27 // pred_region
          %s189 = sand.u32 %s41, 1
          %s190 = scalar_lea.sflag [#allocation3], %s189
          %s191 = sand.u32 %s41, 1
          %s192 = smul.addr %s191, 16
          %s193 = scalar_lea.vmem [#allocation2], %s192
          %s194 = smul.u32 2, %s25
          %s196 = ssub.s32 256, 256
          %197 = vsyncadd %s190, %s196
          %s198 = smul.addr %s24, 2
          %s199 = sadd.s32 %s194, %s198
          %s200 = smul.addr %s199, 128
          %s201 = scalar_lea.hbm %s0, %s200
          %s202 = sshll.u32 %s193, 4
          %s203 = int_to_ptr.vmem [resolvable:$true] %s202
          %208 = dma.hbm_to_vmem [thread:$0]  %s201, 256, %s203, %s190, 128, 128, 8
        $region32: #{tpu_custom_call.1} parent=27 // pred_fallthru
          _
      $region28: #{tpu_custom_call.1} parent=5 // pred_fallthru
        _
      %p209 = scmp.le.s32.totalorder 1, %s17
      %p210 = scmp.lt.s32.totalorder %s17, 3
      %p211 = pnand %p209, %p210
      %p212 = pneg %p211
      // Predicated region
      $region33: #{tpu_custom_call.1} parent=5 // pred_check
        _
      $region34: #{tpu_custom_call.1} parent=5 // pred_check_branch
        %214 = sbr.rel (%p211) target = $region36
      $region35: #{tpu_custom_call.1} parent=5 // pred_region
        %s215 = ssub.s32 %s17, 1
        %s216 = sand.u32 %s44, 1
        %s217 = scalar_lea.sflag [#allocation3], %s216
        %s218 = sand.u32 %s44, 1
        %s219 = smul.addr %s218, 16
        %s220 = scalar_lea.vmem [#allocation2], %s219
        // Predicated region
        $region37: #{tpu_custom_call.1} parent=35 // pred_check
          %p221 = pneg %p57
        $region38: #{tpu_custom_call.1} parent=35 // pred_check_branch
          %223 = sbr.rel (%p221) target = $region40
        $region39: #{tpu_custom_call.1} parent=35 // pred_region
          %224 = dma.done %s217, 256
        $region40: #{tpu_custom_call.1} parent=35 // pred_fallthru
          _
        // Predicated region
        $region41: #{tpu_custom_call.1} parent=35 // pred_check
          %p225 = pneg %p120
        $region42: #{tpu_custom_call.1} parent=35 // pred_check_branch
          %227 = sbr.rel (%p225) target = $region44
        $region43: #{tpu_custom_call.1} parent=35 // pred_region
          %228 = dma.done [#allocation6], 512
        $region44: #{tpu_custom_call.1} parent=35 // pred_fallthru
          _
        %s229 = sand.u32 %s44, 1
        %s230 = scalar_lea.sflag [#allocation3], %s229
        %s231 = sand.u32 %s44, 1
        %s232 = smul.addr %s231, 16
        %s233 = scalar_lea.vmem [#allocation2], %s232
        %p234 = pneg %p57
        %p235 = pneg %p54
        %p236 = pneg %p78
        %p237 = pneg %p75
        %p238 = pneg %p99
        %p239 = pneg %p96
        %p240 = pneg %p120
        %p241 = pneg %p117
        %p242 = pneg %p148
        %p243 = pneg %p145
        %s244 = sand.u32 %s135, 1
        %s245 = scalar_lea.sflag [#allocation4], %s244
        %s246 = sand.u32 %s135, 1
        %s247 = smul.addr %s246, 16
        %s248 = scalar_lea.vmem [#allocation7], %s247
        %s249 = smul.u32 2, %s27
        %s250 = smul.u32 2, %s27
        %v251 = vld [vmem:[%s220] sm:$0xff]
        %v252 = vld [vmem:[%s220 + $0x8] sm:$0xff]
        %v253 = vld [vmem:[%s1] sm:$0x1]
        %v254 = vld [vmem:[%s2] sm:$0x1]
        %vm255 = vcmask 261120
        %v256 = vsel %vm255, %v251, 0.0
        %257 = vadd.xlane.f32.xlu0 %v256
        %v258 = vpop.xlane.xlu0 %257
        %v259 = vsel %vm255, %v252, 0.0
        %260 = vadd.xlane.f32.xlu0 %v259
        %v261 = vpop.xlane.xlu0 %260
        %v262 = vrcp.pop 32.0
        %v263 = vmul.f32 %v258, %v262
        %v264 = vmul.f32 %v261, %v262
        %v265 = vsub.f32 %v251, %v263
        %v266 = vsub.f32 %v252, %v264
        %v267 = vmul.f32 %v265, %v265
        %v268 = vmul.f32 %v266, %v266
        %v269 = vsel %vm255, %v267, 0.0
        %270 = vadd.xlane.f32.xlu0 %v269
        %v271 = vpop.xlane.xlu0 %270
        %v272 = vsel %vm255, %v268, 0.0
        %273 = vadd.xlane.f32.xlu0 %v272
        %v274 = vpop.xlane.xlu0 %273
        %v275 = vmul.f32 %v271, %v262
        %v276 = vmul.f32 %v274, %v262
        %v277 = vadd.f32 %v275, 1e-05
        %v278 = vadd.f32 %v276, 1e-05
        %v279 = vrsqrt.pop %v277
        %v280 = vrsqrt.pop %v278
        %v281 = vmul.f32 %v265, %v279
        %v282 = vmul.f32 %v266, %v280
        %v284 = vlaneseq
        %v285 = vshrl.u32 %v284, 7
        %v286 = vsub.s32 0, %v285
        %v287 = vrot.slane %v253, %v286
        %v289 = vmul.f32 %v281, %v287
        %v290 = vmul.f32 %v282, %v287
        %v292 = vlaneseq
        %v293 = vshrl.u32 %v292, 7
        %v294 = vsub.s32 0, %v293
        %v295 = vrot.slane %v254, %v294
        %v297 = vadd.f32 %v289, %v295
        %v298 = vadd.f32 %v290, %v295
        %v299 = vld [vmem:[#allocation5] sm:$0xff]
        %v300 = vld [vmem:[#allocation5 + $0x8] sm:$0xff]
        %v301 = vld [vmem:[#allocation5 + $0x10] sm:$0xff]
        %v302 = vld [vmem:[#allocation5 + $0x18] sm:$0xff]
        %v304 = vsel %vm255, %v297, 0
        %v307 = vsel %vm255, %v298, 0
        %309 = vmatprep.subr.mxu0 0.0
        %310 = vmatpush1.msra.mxu0 %v299
        %311 = vmatprep.subr.mxu0 0.0
        %312 = vmatpush1.msra.mxu0 %v300
        %313 = vmatprep.subr.mxu0 0.0
        %314 = vmatpush1.msra.mxu0 %v301
        %315 = vmatprep.subr.mxu0 0.0
        %316 = vmatpush1.msra.mxu0 %v302
        %317 = vmatprep.subr.mxu0 0.0
        %318 = vmatpush1.msra.mxu0 0.0
        %319 = vmatprep.subr.mxu0 0.0
        %320 = vmatpush1.msra.mxu0 0.0
        %321 = vmatprep.subr.mxu0 0.0
        %322 = vmatpush1.msra.mxu0 0.0
        %323 = vmatprep.subr.mxu0 0.0
        %324 = vmatpush1.msra.mxu0 0.0
        %325 = vmatprep.subr.mxu0 0.0
        %326 = vmatpush1.msra.mxu0 0.0
        %327 = vmatprep.subr.mxu0 0.0
        %328 = vmatpush1.msra.mxu0 0.0
        %329 = vmatprep.subr.mxu0 0.0
        %330 = vmatpush1.msra.mxu0 0.0
        %331 = vmatprep.subr.mxu0 0.0
        %332 = vmatpush1.msra.mxu0 0.0
        %333 = vmatprep.subr.mxu0 0.0
        %334 = vmatpush1.msra.mxu0 0.0
        %335 = vmatprep.subr.mxu0 0.0
        %336 = vmatpush1.msra.mxu0 0.0
        %337 = vmatprep.subr.mxu0 0.0
        %338 = vmatpush1.msra.mxu0 0.0
        %339 = vmatprep.subr.mxu0 0.0
        %340 = vmatpush1.msra.mxu0 0.0
        %341 = vmatprep.subr.mxu0 0.0
        %342 = vmatpush1.msra.mxu0 0.0
        %343 = vmatprep.subr.mxu0 0.0
        %344 = vmatpush1.msra.mxu0 0.0
        %345 = vmatprep.subr.mxu0 0.0
        %346 = vmatpush1.msra.mxu0 0.0
        %347 = vmatprep.subr.mxu0 0.0
        %348 = vmatpush1.msra.mxu0 0.0
        %349 = vmatprep.subr.mxu0 0.0
        %350 = vmatpush1.msra.mxu0 0.0
        %351 = vmatprep.subr.mxu0 0.0
        %352 = vmatpush1.msra.mxu0 0.0
        %353 = vmatprep.subr.mxu0 0.0
        %354 = vmatpush1.msra.mxu0 0.0
        %355 = vmatprep.subr.mxu0 0.0
        %356 = vmatpush1.msra.mxu0 0.0
        %357 = vmatprep.subr.mxu0 0.0
        %358 = vmatpush1.msra.mxu0 0.0
        %359 = vmatprep.subr.mxu0 0.0
        %360 = vmatpush1.msra.mxu0 0.0
        %361 = vmatprep.subr.mxu0 0.0
        %362 = vmatpush1.msra.mxu0 0.0
        %363 = vmatprep.subr.mxu0 0.0
        %364 = vmatpush1.msra.mxu0 0.0
        %365 = vmatprep.subr.mxu0 0.0
        %366 = vmatpush1.msra.mxu0 0.0
        %367 = vmatprep.subr.mxu0 0.0
        %368 = vmatpush1.msra.mxu0 0.0
        %369 = vmatprep.subr.mxu0 0.0
        %370 = vmatpush1.msra.mxu0 0.0
        %371 = vmatprep.subr.mxu0 0.0
        %372 = vmatpush1.msra.mxu0 0.0
        %373 = vmatprep.mubr.f32.mxu0 0.0
        %374 = vmatmul.mubr.f32.gmra.mrb[0].mxu0 %v304
        %v375 = vpop.f32.mrb[0].mxu0
        %v376 = vadd.f32 0.0, %v375
        %v377 = vpop.f32.mrb[0].mxu0
        %378 = vmatprep.mubr.f32.mxu0 0.0
        %379 = vmatmul.mubr.f32.gmra.mrb[0].mxu0 %v307
        %v380 = vpop.f32.mrb[0].mxu0
        %v381 = vadd.f32 0.0, %v380
        %v382 = vpop.f32.mrb[0].mxu0
        %383 = vdwg.mxu0
        %vm384 = vcmask 523264
        %385 = vst.msk [vmem:[%s248] sm:$0xff] %vm384, %v376
        %386 = vst.msk [vmem:[%s248 + $0x8] sm:$0xff] %vm384, %v381
        %s387 = sand.u32 %s135, 1
        %s388 = scalar_lea.sflag [#allocation4], %s387
        %s389 = sand.u32 %s135, 1
        %s390 = smul.addr %s389, 16
        %s391 = scalar_lea.vmem [#allocation7], %s390
        // Predicated region
        $region45: #{tpu_custom_call.1} parent=35 // pred_check
          %p392 = pneg %p145
        $region46: #{tpu_custom_call.1} parent=35 // pred_check_branch
          %394 = sbr.rel (%p392) target = $region48
        $region47: #{tpu_custom_call.1} parent=35 // pred_region
          %s395 = smul.u32 2, %s27
          %s397 = ssub.s32 256, 256
          %398 = vsyncadd %s388, %s397
          %s399 = smul.addr %s26, 2
          %s400 = sadd.s32 %s395, %s399
          %s401 = smul.addr %s400, 128
          %s402 = scalar_lea.hbm %s4, %s401
          %s403 = sshll.u32 %s391, 4
          %s404 = int_to_ptr.vmem [resolvable:$true] %s403
          %409 = dma.vmem_to_hbm [thread:$0]  %s404, 256, %s402, %s388, 128, 128, 8
        $region48: #{tpu_custom_call.1} parent=35 // pred_fallthru
          _
      $region36: #{tpu_custom_call.1} parent=5 // pred_fallthru
        _
      %p410 = scmp.le.s32.totalorder 2, %s17
      // Predicated region
      $region49: #{tpu_custom_call.1} parent=5 // pred_check
        %p411 = pneg %p410
      $region50: #{tpu_custom_call.1} parent=5 // pred_check_branch
        %413 = sbr.rel (%p411) target = $region52
      $region51: #{tpu_custom_call.1} parent=5 // pred_region
        %s414 = ssub.s32 %s17, 2
        // Predicated region
        $region53: #{tpu_custom_call.1} parent=51 // pred_check
          %p415 = pneg %p151
        $region54: #{tpu_custom_call.1} parent=51 // pred_check_branch
          %417 = sbr.rel (%p415) target = $region56
        $region55: #{tpu_custom_call.1} parent=51 // pred_region
          %s418 = sand.u32 %s136, 1
          %s419 = scalar_lea.sflag [#allocation4], %s418
          %s420 = sand.u32 %s136, 1
          %s421 = smul.addr %s420, 16
          %s422 = scalar_lea.vmem [#allocation7], %s421
          %423 = dma.done %s419, 256
        $region56: #{tpu_custom_call.1} parent=51 // pred_fallthru
          _
      $region52: #{tpu_custom_call.1} parent=5 // pred_fallthru
        _
    $region6: #{tpu_custom_call.1} parent=1 // loop_footer
      %s21 = sadd.s32 1, %s17
    $region7: #{tpu_custom_call.1} parent=1 // loop_footer_branch
      %16 = sbr.rel target = $region3
    $region8: #{tpu_custom_call.1} parent=1 // loop_exit
      _
    %424 = vsyncpa [#allocation3], 1
    %s425 = scalar_lea.sflag [#allocation3], 1
    %426 = vsyncpa %s425, 1
    %427 = vsyncpa [#allocation6], 1
    %428 = vsyncpa [#allocation4], 1
    %s429 = scalar_lea.sflag [#allocation4], 1
    %430 = vsyncpa %s429, 1

</llo_original>
